<compile_context>
chip_gen: v7x
topology: tpu7x:2x2x1
jax: 0.10.0
libtpu: 0.0.40
codegen_flags: <defaults>
</compile_context>

<pallas_src>
import jax
import jax.numpy as jnp
from jax.experimental import pallas as pl
from jax.experimental.pallas import tpu as pltpu

EPS = 1e-5


def adain_kernel(x_ref, scale_ref, beta_ref, o_ref):
    """Fused instance-norm + per-row affine.

    x_ref:     (TR, HW)  activation rows, each row = one (n, c) spatial plane
    scale_ref: (TR, 1)   precomputed (1 + gamma) per row
    beta_ref:  (TR, 1)   beta per row
    """
    x = x_ref[...].astype(jnp.float32)
    g = scale_ref[...].astype(jnp.float32)
    b = beta_ref[...].astype(jnp.float32)

    # One-pass statistics over the lane (HW) axis, kept in fp32.
    mean = jnp.mean(x, axis=-1, keepdims=True)        # (TR, 1)
    mean_sq = jnp.mean(x * x, axis=-1, keepdims=True)  # (TR, 1)
    var = jnp.maximum(mean_sq - mean * mean, 0.0)

    scale = g * jax.lax.rsqrt(var + EPS)               # (TR, 1)
    shift = b - mean * scale                           # (TR, 1)

    # Single multiply-add pass over the full tile.
    o_ref[...] = (x * scale + shift).astype(o_ref.dtype)


def _round_up(a, m):
    return (a + m - 1) // m * m


def _choose_row_block(rows, hw, itemsize, target_bytes=4 << 20):
    """Rows per grid step: multiple of 8, ~target_bytes per VMEM buffer."""
    tr = max(8, (target_bytes // max(1, hw * itemsize)) // 8 * 8)
    tr = min(tr, _round_up(rows, 8))
    return int(tr)


def adain_forward(x_nchw, s, w_fc, b_fc):
    """AdaIN forward. x_nchw: (N, C, H, W), s: (N, S), w_fc: (2C, S), b_fc: (2C,)."""
    N, C, H, W = x_nchw.shape
    HW = H * W
    rows = N * C

    # Style FC hoisted out of the kernel: one batched XLA matmul for the batch.
    h = (jnp.dot(s.astype(jnp.float32), jnp.transpose(w_fc).astype(jnp.float32))
         + b_fc.astype(jnp.float32))                       # (N, 2C)
    scale = (1.0 + h[:, :C]).reshape(rows, 1)              # (N*C, 1) = 1 + gamma
    beta = h[:, C:].reshape(rows, 1)                       # (N*C, 1)

    x = x_nchw.reshape(rows, HW)

    tr = _choose_row_block(rows, HW, x.dtype.itemsize)
    rows_p = _round_up(rows, tr)
    if rows_p != rows:
        pad = rows_p - rows
        x = jnp.pad(x, ((0, pad), (0, 0)))
        scale = jnp.pad(scale, ((0, pad), (0, 0)))
        beta = jnp.pad(beta, ((0, pad), (0, 0)))

    grid = (rows_p // tr,)

    out = pl.pallas_call(
        adain_kernel,
        out_shape=jax.ShapeDtypeStruct((rows_p, HW), x_nchw.dtype),
        grid_spec=pltpu.PrefetchScalarGridSpec(
            num_scalar_prefetch=0,
            grid=grid,
            in_specs=[
                pl.BlockSpec((tr, HW), lambda i: (i, 0)),
                pl.BlockSpec((tr, 1), lambda i: (i, 0)),
                pl.BlockSpec((tr, 1), lambda i: (i, 0)),
            ],
            out_specs=pl.BlockSpec((tr, HW), lambda i: (i, 0)),
        ),
        compiler_params=pltpu.CompilerParams(
            dimension_semantics=("parallel",),
            vmem_limit_bytes=64 << 20,
        ),
    )(x, scale.astype(jnp.float32), beta.astype(jnp.float32))

    return out[:rows].reshape(N, C, H, W)


def adain_reference(x_nchw, s, w_fc, b_fc):
    N, C, H, W = x_nchw.shape
    h = s @ w_fc.T + b_fc                        # (N, 2C)
    gamma = h[:, :C].reshape(N, C, 1, 1)
    beta = h[:, C:].reshape(N, C, 1, 1)
    mean = jnp.mean(x_nchw, axis=(2, 3), keepdims=True)
    var = jnp.mean((x_nchw - mean) ** 2, axis=(2, 3), keepdims=True)
    norm = (x_nchw - mean) / jnp.sqrt(var + EPS)
    return (1.0 + gamma) * norm + beta


if __name__ == "__main__":
    # Small shapes consistent with the module: batch=2, channels=4,
    # spatial=16x16, style_dim=8.
    N, C, H, W = 2, 4, 16, 16
    style_dim = 8

    key = jax.random.PRNGKey(0)
    kx, ks, kw, kb = jax.random.split(key, 4)

    x = jax.random.normal(kx, (N, C, H, W), dtype=jnp.float32)
    s = jax.random.normal(ks, (N, style_dim), dtype=jnp.float32)

    # Deterministic fc parameters (nn.Linear(style_dim, 2*C) shapes).
    bound = 1.0 / jnp.sqrt(style_dim)
    w_fc = jax.random.uniform(kw, (2 * C, style_dim), minval=-bound, maxval=bound,
                              dtype=jnp.float32)
    b_fc = jax.random.uniform(kb, (2 * C,), minval=-bound, maxval=bound,
                              dtype=jnp.float32)

    out = adain_forward(x, s, w_fc, b_fc)
    out = jax.block_until_ready(out)

    ref = adain_reference(x, s, w_fc, b_fc)
    assert out.shape == (N, C, H, W)
    assert jnp.allclose(out, ref, atol=1e-4, rtol=1e-4), "mismatch vs reference"

    print("KERNEL_OK")
</pallas_src>

<mosaic_0001>
module attributes {stable_mosaic.version = 11 : i64} {
  func.func @adain_kernel(%arg0: i32, %arg1: memref<8x256xf32, #tpu.memory_space<vmem>>, %arg2: memref<8x1xf32, #tpu.memory_space<vmem>>, %arg3: memref<8x1xf32, #tpu.memory_space<vmem>>, %arg4: memref<8x256xf32, #tpu.memory_space<vmem>>) attributes {dimension_semantics = [#tpu.dimension_semantics<parallel>], iteration_bounds = array<i64: 1>, scalar_prefetch = 0 : i64, scratch_operands = 0 : i64, tpu.core_type = #tpu.core_type<tc>, window_params = [{transform_indices = @transform_0, window_bounds = array<i64: 8, 256>}, {transform_indices = @transform_1, window_bounds = array<i64: 8, 1>}, {transform_indices = @transform_2, window_bounds = array<i64: 8, 1>}, {transform_indices = @transform_3, window_bounds = array<i64: 8, 256>}]} {
    %c0 = arith.constant 0 : index
    %c0_0 = arith.constant 0 : index
    %0 = vector.load %arg1[%c0, %c0_0] : memref<8x256xf32, #tpu.memory_space<vmem>>, vector<8x256xf32>
    %c0_1 = arith.constant 0 : index
    %c0_2 = arith.constant 0 : index
    %1 = vector.load %arg2[%c0_1, %c0_2] : memref<8x1xf32, #tpu.memory_space<vmem>>, vector<8x1xf32>
    %c0_3 = arith.constant 0 : index
    %c0_4 = arith.constant 0 : index
    %2 = vector.load %arg3[%c0_3, %c0_4] : memref<8x1xf32, #tpu.memory_space<vmem>>, vector<8x1xf32>
    %cst = arith.constant dense<0.000000e+00> : vector<8xf32>
    %3 = vector.multi_reduction <add>, %0, %cst [1] : vector<8x256xf32> to vector<8xf32>
    %4 = vector.shape_cast %3 : vector<8xf32> to vector<8x1xf32>
    %cst_5 = arith.constant 2.560000e+02 : f32
    %5 = vector.broadcast %cst_5 : f32 to vector<8x1xf32>
    %6 = arith.divf %4, %5 : vector<8x1xf32>
    %7 = arith.mulf %0, %0 : vector<8x256xf32>
    %cst_6 = arith.constant dense<0.000000e+00> : vector<8xf32>
    %8 = vector.multi_reduction <add>, %7, %cst_6 [1] : vector<8x256xf32> to vector<8xf32>
    %9 = vector.shape_cast %8 : vector<8xf32> to vector<8x1xf32>
    %cst_7 = arith.constant 2.560000e+02 : f32
    %10 = vector.broadcast %cst_7 : f32 to vector<8x1xf32>
    %11 = arith.divf %9, %10 : vector<8x1xf32>
    %12 = arith.mulf %6, %6 : vector<8x1xf32>
    %13 = arith.subf %11, %12 : vector<8x1xf32>
    %cst_8 = arith.constant 0.000000e+00 : f32
    %14 = vector.broadcast %cst_8 : f32 to vector<8x1xf32>
    %15 = arith.maximumf %13, %14 : vector<8x1xf32>
    %cst_9 = arith.constant 9.99999974E-6 : f32
    %16 = vector.broadcast %cst_9 : f32 to vector<8x1xf32>
    %17 = arith.addf %15, %16 : vector<8x1xf32>
    %18 = math.rsqrt %17 : vector<8x1xf32>
    %19 = arith.mulf %1, %18 : vector<8x1xf32>
    %20 = arith.mulf %6, %19 : vector<8x1xf32>
    %21 = arith.subf %2, %20 : vector<8x1xf32>
    %22 = vector.broadcast %19 : vector<8x1xf32> to vector<8x256xf32>
    %23 = arith.mulf %0, %22 : vector<8x256xf32>
    %24 = vector.broadcast %21 : vector<8x1xf32> to vector<8x256xf32>
    %25 = arith.addf %23, %24 : vector<8x256xf32>
    %c0_10 = arith.constant 0 : index
    %c0_11 = arith.constant 0 : index
    %26 = vector.load %arg4[%c0_10, %c0_11] : memref<8x256xf32, #tpu.memory_space<vmem>>, vector<8x256xf32>
    tpu.vector_store %arg4[%c0_10, %c0_11], %25 {strides = array<i32>} : memref<8x256xf32, #tpu.memory_space<vmem>>, vector<8x256xf32>,
    return
  }
  func.func @transform_0(%arg0: i32) -> (i32, i32) {
    %c0_i32 = arith.constant 0 : i32
    %c0_i32_0 = arith.constant 0 : i32
    return %arg0, %c0_i32 : i32, i32
  }
  func.func @transform_1(%arg0: i32) -> (i32, i32) {
    %c0_i32 = arith.constant 0 : i32
    %c0_i32_0 = arith.constant 0 : i32
    return %arg0, %c0_i32 : i32, i32
  }
  func.func @transform_2(%arg0: i32) -> (i32, i32) {
    %c0_i32 = arith.constant 0 : i32
    %c0_i32_0 = arith.constant 0 : i32
    return %arg0, %c0_i32 : i32, i32
  }
  func.func @transform_3(%arg0: i32) -> (i32, i32) {
    %c0_i32 = arith.constant 0 : i32
    %c0_i32_0 = arith.constant 0 : i32
    return %arg0, %c0_i32 : i32, i32
  }
}

</mosaic_0001>

<llo_original>
// kernel: tpu_custom_call.1
$region0: #{tpu_custom_call.1}
  #allocation0 [shape = 'u32[]', space=smem, size = 0x4, offset = 0x4, fixed_abs, tag = 'smem constant byte address 0x4 - core index']
  #allocation1 [shape = 'u32[144,128]{1,0:T(1,128)}', space=vmem, size = 0x12000, scoped, tag = 'internal scratch']
  %s0 = inlined_call_operand.hbm [shape: f32[8,256], index: 0, kind: input, shape index: {}]
  %s1 = inlined_call_operand.hbm [shape: f32[8,1], index: 1, kind: input, shape index: {}]
  %s2 = inlined_call_operand.hbm [shape: f32[8,1], index: 2, kind: input, shape index: {}]
  %s3 = inlined_call_operand.hbm [shape: f32[8,256], index: 3, kind: output, shape index: {}]
  %s4 = sld [smem:[#allocation0]]
  $region34: #{tpu_custom_call.1} parent=0
    _
  %s6 = ssub.s32 1, %s4
  %s7 = scalar_select 0, %s6, %s4
  $region1: #{tpu_custom_call.1} parent=0
    #allocation2 [shape = 'u8[8192]{0}', space=vmem, size = 0x2000, scoped, tag = 'input window, operand 0, single buffered']
    #allocation3 [shape = 's32[1]{0}', space=sflag, size = 0x4, scoped, tag = 'scoped memory for tpu_custom_call.1']
    #allocation4 [shape = 's32[1]{0}', space=sflag, size = 0x4, scoped, tag = 'scoped memory for tpu_custom_call.1']
    #allocation5 [shape = 'u8[4096]{0}', space=vmem, size = 0x1000, scoped, tag = 'input window, operand 1, single buffered']
    #allocation6 [shape = 's32[1]{0}', space=sflag, size = 0x4, scoped, tag = 'scoped memory for tpu_custom_call.1']
    #allocation7 [shape = 'u8[4096]{0}', space=vmem, size = 0x1000, scoped, tag = 'input window, operand 2, single buffered']
    #allocation8 [shape = 'u8[8192]{0}', space=vmem, size = 0x2000, scoped, tag = 'output window, operand 0, single buffered']
    %8 = vsyncpa [#allocation3], 0
    %9 = vsyncpa [#allocation6], 0
    %10 = vsyncpa [#allocation4], 0
    // Predicated region
    $region2: #{tpu_custom_call.1} parent=1 // pred_check
      _
    $region3: #{tpu_custom_call.1} parent=1 // pred_check_branch
      %12 = sbr.rel (0) target = $region5
    $region4: #{tpu_custom_call.1} parent=1 // pred_region
      %s14 = ssub.s32 256, 256
      %15 = vsyncadd [#allocation3], %s14
      %s17 = sshll.u32 [#allocation2], 4
      %s18 = int_to_ptr.vmem [resolvable:$true] %s17
      %20 = dma.hbm_to_vmem [thread:$0]  %s0, 256, %s18, [#allocation3]
    $region5: #{tpu_custom_call.1} parent=1 // pred_fallthru
      _
    // Predicated region
    $region6: #{tpu_custom_call.1} parent=1 // pred_check
      _
    $region7: #{tpu_custom_call.1} parent=1 // pred_check_branch
      %22 = sbr.rel (0) target = $region9
    $region8: #{tpu_custom_call.1} parent=1 // pred_region
      %s24 = ssub.s32 128, 128
      %25 = vsyncadd [#allocation6], %s24
      %s27 = sshll.u32 [#allocation5], 4
      %s28 = int_to_ptr.vmem [resolvable:$true] %s27
      %30 = dma.hbm_to_vmem [thread:$0]  %s1, 128, %s28, [#allocation6]
    $region9: #{tpu_custom_call.1} parent=1 // pred_fallthru
      _
    // Predicated region
    $region10: #{tpu_custom_call.1} parent=1 // pred_check
      _
    $region11: #{tpu_custom_call.1} parent=1 // pred_check_branch
      %32 = sbr.rel (0) target = $region13
    $region12: #{tpu_custom_call.1} parent=1 // pred_region
      %s34 = ssub.s32 128, 128
      %35 = vsyncadd [#allocation6], %s34
      %s37 = sshll.u32 [#allocation7], 4
      %s38 = int_to_ptr.vmem [resolvable:$true] %s37
      %40 = dma.hbm_to_vmem [thread:$0]  %s2, 128, %s38, [#allocation6]
    $region13: #{tpu_custom_call.1} parent=1 // pred_fallthru
      _
    // Predicated region
    $region14: #{tpu_custom_call.1} parent=1 // pred_check
      _
    $region15: #{tpu_custom_call.1} parent=1 // pred_check_branch
      %42 = sbr.rel (0) target = $region17
    $region16: #{tpu_custom_call.1} parent=1 // pred_region
      %43 = dma.done [#allocation3], 256
    $region17: #{tpu_custom_call.1} parent=1 // pred_fallthru
      _
    // Predicated region
    $region18: #{tpu_custom_call.1} parent=1 // pred_check
      _
    $region19: #{tpu_custom_call.1} parent=1 // pred_check_branch
      %45 = sbr.rel (0) target = $region21
    $region20: #{tpu_custom_call.1} parent=1 // pred_region
      %46 = dma.done [#allocation6], 128
    $region21: #{tpu_custom_call.1} parent=1 // pred_fallthru
      _
    // Predicated region
    $region22: #{tpu_custom_call.1} parent=1 // pred_check
      _
    $region23: #{tpu_custom_call.1} parent=1 // pred_check_branch
      %48 = sbr.rel (0) target = $region25
    $region24: #{tpu_custom_call.1} parent=1 // pred_region
      %49 = dma.done [#allocation6], 128
    $region25: #{tpu_custom_call.1} parent=1 // pred_fallthru
      _
    %v50 = vld [vmem:[#allocation2] sm:$0xff]
    %v51 = vld [vmem:[#allocation2 + $0x8] sm:$0xff]
    %v52 = vld [vmem:[#allocation5] sm:$0xff]
    %v53 = vld [vmem:[#allocation7] sm:$0xff]
    %v54 = vadd.f32 %v50, %v51
    %55 = vadd.xlane.f32.xlu0 %v54
    %v56 = vpop.xlane.xlu0 %55
    %v57 = vrcp.pop 256.0
    %v58 = vmul.f32 %v56, %v57
    %v59 = vmul.f32 %v50, %v50
    %v60 = vmul.f32 %v51, %v51
    %v61 = vadd.f32 %v59, %v60
    %62 = vadd.xlane.f32.xlu0 %v61
    %v63 = vpop.xlane.xlu0 %62
    %v64 = vmul.f32 %v63, %v57
    %v65 = vmul.f32 %v58, %v58
    %v66 = vsub.f32 %v64, %v65
    %v67 = vmax.f32 %v66, 0.0
    %v68 = vadd.f32 %v67, 1e-05
    %v69 = vrsqrt.pop %v68
    %v70 = vmul.f32 %v52, %v69
    %v71 = vmul.f32 %v58, %v70
    %v72 = vsub.f32 %v53, %v71
    %74 = vset.pattern.permute.xlu0 0
    %75 = vperm.xlu0 %74, %v70
    %v76 = vpop.permute.xlu0 %75
    %v78 = vmul.f32 %v50, %v76
    %v79 = vmul.f32 %v51, %v76
    %81 = vset.pattern.permute.xlu0 0
    %82 = vperm.xlu0 %81, %v72
    %v83 = vpop.permute.xlu0 %82
    %v85 = vadd.f32 %v78, %v83
    %v86 = vadd.f32 %v79, %v83
    %87 = vst [vmem:[#allocation8] sm:$0xff] %v85
    %88 = vst [vmem:[#allocation8 + $0x8] sm:$0xff] %v86
    // Predicated region
    $region26: #{tpu_custom_call.1} parent=1 // pred_check
      _
    $region27: #{tpu_custom_call.1} parent=1 // pred_check_branch
      %90 = sbr.rel (0) target = $region29
    $region28: #{tpu_custom_call.1} parent=1 // pred_region
      %s92 = ssub.s32 256, 256
      %93 = vsyncadd [#allocation4], %s92
      %s95 = sshll.u32 [#allocation8], 4
      %s96 = int_to_ptr.vmem [resolvable:$true] %s95
      %98 = dma.vmem_to_hbm [thread:$0]  %s96, 256, %s3, [#allocation4]
    $region29: #{tpu_custom_call.1} parent=1 // pred_fallthru
      _
    // Predicated region
    $region30: #{tpu_custom_call.1} parent=1 // pred_check
      _
    $region31: #{tpu_custom_call.1} parent=1 // pred_check_branch
      %100 = sbr.rel (0) target = $region33
    $region32: #{tpu_custom_call.1} parent=1 // pred_region
      %101 = dma.done [#allocation4], 256
    $region33: #{tpu_custom_call.1} parent=1 // pred_fallthru
      _
    %102 = vsyncpa [#allocation3], 1
    %103 = vsyncpa [#allocation6], 1
    %104 = vsyncpa [#allocation4], 1

</llo_original>
